<compile_context>
chip_gen: v7x
topology: tpu7x:2x2x1
jax: 0.10.0
libtpu: 0.0.40
codegen_flags: <defaults>
</compile_context>

<pallas_src>
import functools

import numpy as np
import jax
import jax.numpy as jnp
from jax.experimental import pallas as pl
from jax.experimental.pallas import tpu as pltpu


# ----------------------------- graph definition -----------------------------

def initialize_connections(code_len):
    """connections[i, j] = 1 iff bit i of j is 0 (the 'upper' node of each pair)."""
    l_stages = int(np.log2(code_len))
    conn = np.zeros((l_stages, code_len), dtype=np.int64)
    for i in range(l_stages):
        for j in range(code_len):
            if ((j >> i) & 1) == 0:
                conn[i, j] = 1
    return conn


def get_masks_dicts_np(code_len, connections):
    """NumPy replica of the torch get_masks_dicts (pi = identity)."""
    l_stages = int(np.log2(code_len))
    maskt = connections.T.astype(bool)          # (code_len, l_stages)
    mask_d, neg_d = {}, {}
    idx = np.arange(code_len)
    for i in range(l_stages):
        m = maskt[:, i]
        mask_d[i] = idx[m]
        neg_d[i] = idx[~m]
    return mask_d, neg_d


def np_min_sum(x, y):
    return np.sign(x) * np.sign(y) * np.minimum(np.abs(x), np.abs(y))


def reference_iterate_left(right, left, weights, it, clipping_val, mask_d, neg_d):
    """Pure-NumPy port of IterateLeftLayer.forward (ground truth)."""
    left = np.array(left, copy=True)
    num_stages = len(mask_d)
    w = np.asarray(weights)[it]
    for i in reversed(range(num_stages)):
        lp0 = left[:, i + 1, neg_d[i]]
        lp1 = left[:, i + 1, mask_d[i]]
        rp0 = right[:, i, neg_d[i]]
        rp1 = right[:, i, mask_d[i]]
        left[:, i, mask_d[i]] = w[i, 0] * np_min_sum(lp1, lp0 + rp0)
        left[:, i, neg_d[i]] = w[i, 1] * np_min_sum(lp1, rp1) + lp0
    return np.clip(left, -clipping_val, clipping_val)


# -------------------------------- Pallas kernel ------------------------------

def _roll_lanes(x, shift):
    """Cyclic lane rotation; matches jnp.roll(x, shift, axis=-1); shift may be < 0."""
    L = x.shape[-1]
    return pltpu.roll(x, shift % L, axis=x.ndim - 1)


def _min_sum_f32(x, y):
    """sign(x)*sign(y)*min(|x|,|y|) via the sign-bit trick (f32 only, VALU-lean)."""
    sign = (pltpu.bitcast(x, jnp.uint32) ^ pltpu.bitcast(y, jnp.uint32)) \
        & jnp.uint32(0x80000000)
    mag = jnp.minimum(jnp.abs(x), jnp.abs(y))
    return pltpu.bitcast(pltpu.bitcast(mag, jnp.uint32) | sign, jnp.float32)


def _iterate_left_kernel(w_ref, right_ref, ltop_ref, out_ref, *,
                         num_stages, clipping_val):
    # w_ref     : SMEM (num_stages, 2) f32        per-iteration weights
    # right_ref : VMEM (num_stages, Bt, L)        stage-major, lane-packed
    # ltop_ref  : VMEM (Bt, L)                    left[:, num_stages, :] only
    # out_ref   : VMEM (num_stages + 1, Bt, L)    stage-major, lane-packed
    Bt, L = ltop_ref.shape
    lane = jax.lax.broadcasted_iota(jnp.int32, (Bt, L), dimension=1)
    clip = jnp.float32(clipping_val)

    top = ltop_ref[...].astype(jnp.float32)
    # the top stage row is untouched by the recurrence, only clamped at the end
    out_ref[num_stages] = jnp.clip(top, -clip, clip).astype(out_ref.dtype)

    l_next = top  # carries the UNCLAMPED previously-computed row left[:, i+1, :]
    for i in reversed(range(num_stages)):
        s = 1 << i
        m = (lane & s) == 0                       # bit i of node index == 0 ("mask")
        r = right_ref[i].astype(jnp.float32)
        w0 = w_ref[i, 0]
        w1 = w_ref[i, 1]
        # mask (upper) lanes j:  w0 * min_sum(l[j],   l[j+s] + r[j+s])
        a = w0 * _min_sum_f32(l_next, _roll_lanes(l_next, -s) + _roll_lanes(r, -s))
        # neg  (lower) lanes j:  w1 * min_sum(l[j-s], r[j-s]) + l[j]
        b = w1 * _min_sum_f32(_roll_lanes(l_next, s), _roll_lanes(r, s)) + l_next
        new_row = jnp.where(m, a, b)
        out_ref[i] = jnp.clip(new_row, -clip, clip).astype(out_ref.dtype)
        l_next = new_row


def _round_up(x, m):
    return (x + m - 1) // m * m


def iterate_left_pallas(right, left, left_weights, it, clipping_val, *,
                        batch_tile=128):
    """Pallas port of IterateLeftLayer.forward; returns the new `left` tensor."""
    B, Sp1, N = left.shape
    S = Sp1 - 1
    assert right.shape == (B, S, N)

    w_iter = left_weights[it].astype(jnp.float32)             # (S, 2) -> SMEM

    # ---------- layout plumbing (would live upstream in production) ----------
    # Lane packing for small codes: g codewords share one 128-lane row.
    g = max(1, 128 // N)
    L = g * N

    Bq = _round_up(B, g) // g                   # packed batch rows
    Bt = min(batch_tile, Bq)                    # batch tile per grid step
    Bq_pad = _round_up(Bq, Bt)
    B_pad = Bq_pad * g

    left_top = left[:, S, :]                    # the only row of `left` ever read
    if B_pad != B:
        pad = B_pad - B
        right = jnp.pad(right, ((0, pad), (0, 0), (0, 0)))
        left_top = jnp.pad(left_top, ((0, pad), (0, 0)))

    right_sm = jnp.transpose(right, (1, 0, 2)).reshape(S, Bq_pad, L)  # stage-major
    ltop = left_top.reshape(Bq_pad, L)

    kernel = functools.partial(_iterate_left_kernel, num_stages=S,
                               clipping_val=float(clipping_val))
    out_sm = pl.pallas_call(
        kernel,
        out_shape=jax.ShapeDtypeStruct((Sp1, Bq_pad, L), left.dtype),
        grid_spec=pltpu.PrefetchScalarGridSpec(
            num_scalar_prefetch=0,
            grid=(Bq_pad // Bt,),
            in_specs=[
                pl.BlockSpec(memory_space=pltpu.MemorySpace.SMEM),    # weights slice
                pl.BlockSpec((S, Bt, L), lambda b: (0, b, 0)),        # right
                pl.BlockSpec((Bt, L), lambda b: (b, 0)),              # left top row
            ],
            out_specs=pl.BlockSpec((Sp1, Bt, L), lambda b: (0, b, 0)),
        ),
        compiler_params=pltpu.CompilerParams(
            dimension_semantics=("parallel",)),
    )(w_iter, right_sm, ltop)

    # unpack lanes, drop batch padding, back to the module's (B, S+1, N) layout
    out = jnp.transpose(out_sm.reshape(Sp1, B_pad, N), (1, 0, 2))
    return out[:B]


# ------------------------------------ main -----------------------------------

if __name__ == "__main__":
    configs = [
        # (code_len, batch, num_hidden_layers, it, clipping_val, batch_tile)
        (16, 2, 3, 1, 2.0, 128),   # tiny demo shape: lane-packed path, grid = (1,)
        (128, 16, 2, 0, 3.0, 8),   # unpacked path, batch-tiled grid = (2,)
    ]
    for code_len, batch, num_hidden_layers, it, clipping_val, btile in configs:
        num_stages = int(np.log2(code_len))

        key = jax.random.PRNGKey(0)
        k_r, k_l = jax.random.split(key)
        right = (2.0 * jax.random.normal(
            k_r, (batch, num_stages, code_len))).astype(jnp.float32)
        left = (2.0 * jax.random.normal(
            k_l, (batch, num_stages + 1, code_len))).astype(jnp.float32)

        # Module init is torch.ones(...); add a tiny deterministic ramp so the
        # per-stage weighting is actually exercised.
        left_weights = (
            jnp.ones((num_hidden_layers, num_stages, 2), jnp.float32)
            + 0.05 * jnp.arange(num_hidden_layers * num_stages * 2,
                                dtype=jnp.float32
                                ).reshape(num_hidden_layers, num_stages, 2))

        out = iterate_left_pallas(right, left, left_weights, it, clipping_val,
                                  batch_tile=btile)
        out = jax.block_until_ready(out)

        # Cross-check against a direct NumPy port of the torch forward.
        conn = initialize_connections(code_len)
        mask_d, neg_d = get_masks_dicts_np(code_len, conn)
        ref = reference_iterate_left(np.asarray(right), np.asarray(left),
                                     np.asarray(left_weights), it, clipping_val,
                                     mask_d, neg_d)
        np.testing.assert_allclose(np.asarray(out), ref, rtol=1e-5, atol=1e-5)

    print("KERNEL_OK")
</pallas_src>

<mosaic_0001>
module attributes {stable_mosaic.version = 11 : i64} {
  func.func @_iterate_left_kernel(%arg0: i32, %arg1: memref<4x2xf32, #tpu.memory_space<smem>>, %arg2: memref<4x1x128xf32, #tpu.memory_space<vmem>>, %arg3: memref<1x128xf32, #tpu.memory_space<vmem>>, %arg4: memref<5x1x128xf32, #tpu.memory_space<vmem>>) attributes {dimension_semantics = [#tpu.dimension_semantics<parallel>], iteration_bounds = array<i64: 1>, scalar_prefetch = 0 : i64, scratch_operands = 0 : i64, tpu.core_type = #tpu.core_type<tc>, window_params = [{transform_indices = @transform_0, window_bounds = array<i64: 4, 2>}, {transform_indices = @transform_1, window_bounds = array<i64: 4, 1, 128>}, {transform_indices = @transform_2, window_bounds = array<i64: 1, 128>}, {transform_indices = @transform_3, window_bounds = array<i64: 5, 1, 128>}]} {
    %0 = tpu.iota {dimensions = array<i32: 1>} : vector<1x128xi32>
    %c0 = arith.constant 0 : index
    %c0_0 = arith.constant 0 : index
    %1 = vector.load %arg3[%c0, %c0_0] : memref<1x128xf32, #tpu.memory_space<vmem>>, vector<1x128xf32>
    %cst = arith.constant 0.000000e+00 : f32
    %cst_1 = arith.constant 2.000000e+00 : f32
    %2 = arith.subf %cst, %cst_1 : f32
    %cst_2 = arith.constant 2.000000e+00 : f32
    %3 = vector.broadcast %2 : f32 to vector<1x128xf32>
    %4 = arith.maximumf %3, %1 : vector<1x128xf32>
    %5 = vector.broadcast %cst_2 : f32 to vector<1x128xf32>
    %6 = arith.minimumf %5, %4 : vector<1x128xf32>
    %c4 = arith.constant 4 : index
    %c0_3 = arith.constant 0 : index
    %c0_4 = arith.constant 0 : index
    %7 = vector.load %arg4[%c4, %c0_3, %c0_4] : memref<5x1x128xf32, #tpu.memory_space<vmem>>, vector<1x1x128xf32>
    %8 = vector.shape_cast %7 : vector<1x1x128xf32> to vector<1x128xf32>
    %9 = vector.shape_cast %6 : vector<1x128xf32> to vector<1x1x128xf32>
    tpu.vector_store %arg4[%c4, %c0_3, %c0_4], %9 {strides = array<i32>} : memref<5x1x128xf32, #tpu.memory_space<vmem>>, vector<1x1x128xf32>,
    %c8_i32 = arith.constant 8 : i32
    %10 = vector.broadcast %c8_i32 : i32 to vector<1x128xi32>
    %11 = arith.andi %0, %10 : vector<1x128xi32>
    %c0_i32 = arith.constant 0 : i32
    %12 = vector.broadcast %c0_i32 : i32 to vector<1x128xi32>
    %13 = arith.cmpi eq, %11, %12 : vector<1x128xi32>
    %c3 = arith.constant 3 : index
    %c0_5 = arith.constant 0 : index
    %c0_6 = arith.constant 0 : index
    %14 = vector.load %arg2[%c3, %c0_5, %c0_6] : memref<4x1x128xf32, #tpu.memory_space<vmem>>, vector<1x1x128xf32>
    %15 = vector.shape_cast %14 : vector<1x1x128xf32> to vector<1x128xf32>
    %c3_7 = arith.constant 3 : index
    %c0_8 = arith.constant 0 : index
    %16 = memref.load %arg1[%c3_7, %c0_8] : memref<4x2xf32, #tpu.memory_space<smem>>
    %c3_9 = arith.constant 3 : index
    %c1 = arith.constant 1 : index
    %17 = memref.load %arg1[%c3_9, %c1] : memref<4x2xf32, #tpu.memory_space<smem>>
    %c120_i32 = arith.constant 120 : i32
    %18 = tpu.dynamic_rotate %1 by %c120_i32 dim 1 : vector<1x128xf32>, i32 -> vector<1x128xf32>
    %c120_i32_10 = arith.constant 120 : i32
    %19 = tpu.dynamic_rotate %15 by %c120_i32_10 dim 1 : vector<1x128xf32>, i32 -> vector<1x128xf32>
    %20 = arith.addf %18, %19 : vector<1x128xf32>
    %21 = tpu.bitcast %1 : vector<1x128xf32> -> vector<1x128xi32>
    %22 = tpu.bitcast %20 : vector<1x128xf32> -> vector<1x128xi32>
    %23 = arith.xori %21, %22 : vector<1x128xi32>
    %c-2147483648_i32 = arith.constant -2147483648 : i32
    %24 = vector.broadcast %c-2147483648_i32 : i32 to vector<1x128xi32>
    %25 = arith.andi %23, %24 : vector<1x128xi32>
    %26 = math.absf %1 : vector<1x128xf32>
    %27 = math.absf %20 : vector<1x128xf32>
    %28 = arith.minimumf %26, %27 : vector<1x128xf32>
    %29 = tpu.bitcast %28 : vector<1x128xf32> -> vector<1x128xi32>
    %30 = arith.ori %29, %25 : vector<1x128xi32>
    %31 = tpu.bitcast %30 : vector<1x128xi32> -> vector<1x128xf32>
    %32 = vector.broadcast %16 : f32 to vector<1x128xf32>
    %33 = arith.mulf %32, %31 : vector<1x128xf32>
    %c8_i32_11 = arith.constant 8 : i32
    %34 = tpu.dynamic_rotate %1 by %c8_i32_11 dim 1 : vector<1x128xf32>, i32 -> vector<1x128xf32>
    %c8_i32_12 = arith.constant 8 : i32
    %35 = tpu.dynamic_rotate %15 by %c8_i32_12 dim 1 : vector<1x128xf32>, i32 -> vector<1x128xf32>
    %36 = tpu.bitcast %34 : vector<1x128xf32> -> vector<1x128xi32>
    %37 = tpu.bitcast %35 : vector<1x128xf32> -> vector<1x128xi32>
    %38 = arith.xori %36, %37 : vector<1x128xi32>
    %c-2147483648_i32_13 = arith.constant -2147483648 : i32
    %39 = vector.broadcast %c-2147483648_i32_13 : i32 to vector<1x128xi32>
    %40 = arith.andi %38, %39 : vector<1x128xi32>
    %41 = math.absf %34 : vector<1x128xf32>
    %42 = math.absf %35 : vector<1x128xf32>
    %43 = arith.minimumf %41, %42 : vector<1x128xf32>
    %44 = tpu.bitcast %43 : vector<1x128xf32> -> vector<1x128xi32>
    %45 = arith.ori %44, %40 : vector<1x128xi32>
    %46 = tpu.bitcast %45 : vector<1x128xi32> -> vector<1x128xf32>
    %47 = vector.broadcast %17 : f32 to vector<1x128xf32>
    %48 = arith.mulf %47, %46 : vector<1x128xf32>
    %49 = arith.addf %48, %1 : vector<1x128xf32>
    %50 = arith.select %13, %33, %49 : vector<1x128xi1>, vector<1x128xf32>
    %cst_14 = arith.constant 0.000000e+00 : f32
    %cst_15 = arith.constant 2.000000e+00 : f32
    %51 = arith.subf %cst_14, %cst_15 : f32
    %cst_16 = arith.constant 2.000000e+00 : f32
    %52 = vector.broadcast %51 : f32 to vector<1x128xf32>
    %53 = arith.maximumf %52, %50 : vector<1x128xf32>
    %54 = vector.broadcast %cst_16 : f32 to vector<1x128xf32>
    %55 = arith.minimumf %54, %53 : vector<1x128xf32>
    %c3_17 = arith.constant 3 : index
    %c0_18 = arith.constant 0 : index
    %c0_19 = arith.constant 0 : index
    %56 = vector.load %arg4[%c3_17, %c0_18, %c0_19] : memref<5x1x128xf32, #tpu.memory_space<vmem>>, vector<1x1x128xf32>
    %57 = vector.shape_cast %56 : vector<1x1x128xf32> to vector<1x128xf32>
    %58 = vector.shape_cast %55 : vector<1x128xf32> to vector<1x1x128xf32>
    tpu.vector_store %arg4[%c3_17, %c0_18, %c0_19], %58 {strides = array<i32>} : memref<5x1x128xf32, #tpu.memory_space<vmem>>, vector<1x1x128xf32>,
    %c4_i32 = arith.constant 4 : i32
    %59 = vector.broadcast %c4_i32 : i32 to vector<1x128xi32>
    %60 = arith.andi %0, %59 : vector<1x128xi32>
    %c0_i32_20 = arith.constant 0 : i32
    %61 = vector.broadcast %c0_i32_20 : i32 to vector<1x128xi32>
    %62 = arith.cmpi eq, %60, %61 : vector<1x128xi32>
    %c2 = arith.constant 2 : index
    %c0_21 = arith.constant 0 : index
    %c0_22 = arith.constant 0 : index
    %63 = vector.load %arg2[%c2, %c0_21, %c0_22] : memref<4x1x128xf32, #tpu.memory_space<vmem>>, vector<1x1x128xf32>
    %64 = vector.shape_cast %63 : vector<1x1x128xf32> to vector<1x128xf32>
    %c2_23 = arith.constant 2 : index
    %c0_24 = arith.constant 0 : index
    %65 = memref.load %arg1[%c2_23, %c0_24] : memref<4x2xf32, #tpu.memory_space<smem>>
    %c2_25 = arith.constant 2 : index
    %c1_26 = arith.constant 1 : index
    %66 = memref.load %arg1[%c2_25, %c1_26] : memref<4x2xf32, #tpu.memory_space<smem>>
    %c124_i32 = arith.constant 124 : i32
    %67 = tpu.dynamic_rotate %50 by %c124_i32 dim 1 : vector<1x128xf32>, i32 -> vector<1x128xf32>
    %c124_i32_27 = arith.constant 124 : i32
    %68 = tpu.dynamic_rotate %64 by %c124_i32_27 dim 1 : vector<1x128xf32>, i32 -> vector<1x128xf32>
    %69 = arith.addf %67, %68 : vector<1x128xf32>
    %70 = tpu.bitcast %50 : vector<1x128xf32> -> vector<1x128xi32>
    %71 = tpu.bitcast %69 : vector<1x128xf32> -> vector<1x128xi32>
    %72 = arith.xori %70, %71 : vector<1x128xi32>
    %c-2147483648_i32_28 = arith.constant -2147483648 : i32
    %73 = vector.broadcast %c-2147483648_i32_28 : i32 to vector<1x128xi32>
    %74 = arith.andi %72, %73 : vector<1x128xi32>
    %75 = math.absf %50 : vector<1x128xf32>
    %76 = math.absf %69 : vector<1x128xf32>
    %77 = arith.minimumf %75, %76 : vector<1x128xf32>
    %78 = tpu.bitcast %77 : vector<1x128xf32> -> vector<1x128xi32>
    %79 = arith.ori %78, %74 : vector<1x128xi32>
    %80 = tpu.bitcast %79 : vector<1x128xi32> -> vector<1x128xf32>
    %81 = vector.broadcast %65 : f32 to vector<1x128xf32>
    %82 = arith.mulf %81, %80 : vector<1x128xf32>
    %c4_i32_29 = arith.constant 4 : i32
    %83 = tpu.dynamic_rotate %50 by %c4_i32_29 dim 1 : vector<1x128xf32>, i32 -> vector<1x128xf32>
    %c4_i32_30 = arith.constant 4 : i32
    %84 = tpu.dynamic_rotate %64 by %c4_i32_30 dim 1 : vector<1x128xf32>, i32 -> vector<1x128xf32>
    %85 = tpu.bitcast %83 : vector<1x128xf32> -> vector<1x128xi32>
    %86 = tpu.bitcast %84 : vector<1x128xf32> -> vector<1x128xi32>
    %87 = arith.xori %85, %86 : vector<1x128xi32>
    %c-2147483648_i32_31 = arith.constant -2147483648 : i32
    %88 = vector.broadcast %c-2147483648_i32_31 : i32 to vector<1x128xi32>
    %89 = arith.andi %87, %88 : vector<1x128xi32>
    %90 = math.absf %83 : vector<1x128xf32>
    %91 = math.absf %84 : vector<1x128xf32>
    %92 = arith.minimumf %90, %91 : vector<1x128xf32>
    %93 = tpu.bitcast %92 : vector<1x128xf32> -> vector<1x128xi32>
    %94 = arith.ori %93, %89 : vector<1x128xi32>
    %95 = tpu.bitcast %94 : vector<1x128xi32> -> vector<1x128xf32>
    %96 = vector.broadcast %66 : f32 to vector<1x128xf32>
    %97 = arith.mulf %96, %95 : vector<1x128xf32>
    %98 = arith.addf %97, %50 : vector<1x128xf32>
    %99 = arith.select %62, %82, %98 : vector<1x128xi1>, vector<1x128xf32>
    %cst_32 = arith.constant 0.000000e+00 : f32
    %cst_33 = arith.constant 2.000000e+00 : f32
    %100 = arith.subf %cst_32, %cst_33 : f32
    %cst_34 = arith.constant 2.000000e+00 : f32
    %101 = vector.broadcast %100 : f32 to vector<1x128xf32>
    %102 = arith.maximumf %101, %99 : vector<1x128xf32>
    %103 = vector.broadcast %cst_34 : f32 to vector<1x128xf32>
    %104 = arith.minimumf %103, %102 : vector<1x128xf32>
    %c2_35 = arith.constant 2 : index
    %c0_36 = arith.constant 0 : index
    %c0_37 = arith.constant 0 : index
    %105 = vector.load %arg4[%c2_35, %c0_36, %c0_37] : memref<5x1x128xf32, #tpu.memory_space<vmem>>, vector<1x1x128xf32>
    %106 = vector.shape_cast %105 : vector<1x1x128xf32> to vector<1x128xf32>
    %107 = vector.shape_cast %104 : vector<1x128xf32> to vector<1x1x128xf32>
    tpu.vector_store %arg4[%c2_35, %c0_36, %c0_37], %107 {strides = array<i32>} : memref<5x1x128xf32, #tpu.memory_space<vmem>>, vector<1x1x128xf32>,
    %c2_i32 = arith.constant 2 : i32
    %108 = vector.broadcast %c2_i32 : i32 to vector<1x128xi32>
    %109 = arith.andi %0, %108 : vector<1x128xi32>
    %c0_i32_38 = arith.constant 0 : i32
    %110 = vector.broadcast %c0_i32_38 : i32 to vector<1x128xi32>
    %111 = arith.cmpi eq, %109, %110 : vector<1x128xi32>
    %c1_39 = arith.constant 1 : index
    %c0_40 = arith.constant 0 : index
    %c0_41 = arith.constant 0 : index
    %112 = vector.load %arg2[%c1_39, %c0_40, %c0_41] : memref<4x1x128xf32, #tpu.memory_space<vmem>>, vector<1x1x128xf32>
    %113 = vector.shape_cast %112 : vector<1x1x128xf32> to vector<1x128xf32>
    %c1_42 = arith.constant 1 : index
    %c0_43 = arith.constant 0 : index
    %114 = memref.load %arg1[%c1_42, %c0_43] : memref<4x2xf32, #tpu.memory_space<smem>>
    %c1_44 = arith.constant 1 : index
    %c1_45 = arith.constant 1 : index
    %115 = memref.load %arg1[%c1_44, %c1_45] : memref<4x2xf32, #tpu.memory_space<smem>>
    %c126_i32 = arith.constant 126 : i32
    %116 = tpu.dynamic_rotate %99 by %c126_i32 dim 1 : vector<1x128xf32>, i32 -> vector<1x128xf32>
    %c126_i32_46 = arith.constant 126 : i32
    %117 = tpu.dynamic_rotate %113 by %c126_i32_46 dim 1 : vector<1x128xf32>, i32 -> vector<1x128xf32>
    %118 = arith.addf %116, %117 : vector<1x128xf32>
    %119 = tpu.bitcast %99 : vector<1x128xf32> -> vector<1x128xi32>
    %120 = tpu.bitcast %118 : vector<1x128xf32> -> vector<1x128xi32>
    %121 = arith.xori %119, %120 : vector<1x128xi32>
    %c-2147483648_i32_47 = arith.constant -2147483648 : i32
    %122 = vector.broadcast %c-2147483648_i32_47 : i32 to vector<1x128xi32>
    %123 = arith.andi %121, %122 : vector<1x128xi32>
    %124 = math.absf %99 : vector<1x128xf32>
    %125 = math.absf %118 : vector<1x128xf32>
    %126 = arith.minimumf %124, %125 : vector<1x128xf32>
    %127 = tpu.bitcast %126 : vector<1x128xf32> -> vector<1x128xi32>
    %128 = arith.ori %127, %123 : vector<1x128xi32>
    %129 = tpu.bitcast %128 : vector<1x128xi32> -> vector<1x128xf32>
    %130 = vector.broadcast %114 : f32 to vector<1x128xf32>
    %131 = arith.mulf %130, %129 : vector<1x128xf32>
    %c2_i32_48 = arith.constant 2 : i32
    %132 = tpu.dynamic_rotate %99 by %c2_i32_48 dim 1 : vector<1x128xf32>, i32 -> vector<1x128xf32>
    %c2_i32_49 = arith.constant 2 : i32
    %133 = tpu.dynamic_rotate %113 by %c2_i32_49 dim 1 : vector<1x128xf32>, i32 -> vector<1x128xf32>
    %134 = tpu.bitcast %132 : vector<1x128xf32> -> vector<1x128xi32>
    %135 = tpu.bitcast %133 : vector<1x128xf32> -> vector<1x128xi32>
    %136 = arith.xori %134, %135 : vector<1x128xi32>
    %c-2147483648_i32_50 = arith.constant -2147483648 : i32
    %137 = vector.broadcast %c-2147483648_i32_50 : i32 to vector<1x128xi32>
    %138 = arith.andi %136, %137 : vector<1x128xi32>
    %139 = math.absf %132 : vector<1x128xf32>
    %140 = math.absf %133 : vector<1x128xf32>
    %141 = arith.minimumf %139, %140 : vector<1x128xf32>
    %142 = tpu.bitcast %141 : vector<1x128xf32> -> vector<1x128xi32>
    %143 = arith.ori %142, %138 : vector<1x128xi32>
    %144 = tpu.bitcast %143 : vector<1x128xi32> -> vector<1x128xf32>
    %145 = vector.broadcast %115 : f32 to vector<1x128xf32>
    %146 = arith.mulf %145, %144 : vector<1x128xf32>
    %147 = arith.addf %146, %99 : vector<1x128xf32>
    %148 = arith.select %111, %131, %147 : vector<1x128xi1>, vector<1x128xf32>
    %cst_51 = arith.constant 0.000000e+00 : f32
    %cst_52 = arith.constant 2.000000e+00 : f32
    %149 = arith.subf %cst_51, %cst_52 : f32
    %cst_53 = arith.constant 2.000000e+00 : f32
    %150 = vector.broadcast %149 : f32 to vector<1x128xf32>
    %151 = arith.maximumf %150, %148 : vector<1x128xf32>
    %152 = vector.broadcast %cst_53 : f32 to vector<1x128xf32>
    %153 = arith.minimumf %152, %151 : vector<1x128xf32>
    %c1_54 = arith.constant 1 : index
    %c0_55 = arith.constant 0 : index
    %c0_56 = arith.constant 0 : index
    %154 = vector.load %arg4[%c1_54, %c0_55, %c0_56] : memref<5x1x128xf32, #tpu.memory_space<vmem>>, vector<1x1x128xf32>
    %155 = vector.shape_cast %154 : vector<1x1x128xf32> to vector<1x128xf32>
    %156 = vector.shape_cast %153 : vector<1x128xf32> to vector<1x1x128xf32>
    tpu.vector_store %arg4[%c1_54, %c0_55, %c0_56], %156 {strides = array<i32>} : memref<5x1x128xf32, #tpu.memory_space<vmem>>, vector<1x1x128xf32>,
    %c1_i32 = arith.constant 1 : i32
    %157 = vector.broadcast %c1_i32 : i32 to vector<1x128xi32>
    %158 = arith.andi %0, %157 : vector<1x128xi32>
    %c0_i32_57 = arith.constant 0 : i32
    %159 = vector.broadcast %c0_i32_57 : i32 to vector<1x128xi32>
    %160 = arith.cmpi eq, %158, %159 : vector<1x128xi32>
    %c0_58 = arith.constant 0 : index
    %c0_59 = arith.constant 0 : index
    %c0_60 = arith.constant 0 : index
    %161 = vector.load %arg2[%c0_58, %c0_59, %c0_60] : memref<4x1x128xf32, #tpu.memory_space<vmem>>, vector<1x1x128xf32>
    %162 = vector.shape_cast %161 : vector<1x1x128xf32> to vector<1x128xf32>
    %c0_61 = arith.constant 0 : index
    %c0_62 = arith.constant 0 : index
    %163 = memref.load %arg1[%c0_61, %c0_62] : memref<4x2xf32, #tpu.memory_space<smem>>
    %c0_63 = arith.constant 0 : index
    %c1_64 = arith.constant 1 : index
    %164 = memref.load %arg1[%c0_63, %c1_64] : memref<4x2xf32, #tpu.memory_space<smem>>
    %c127_i32 = arith.constant 127 : i32
    %165 = tpu.dynamic_rotate %148 by %c127_i32 dim 1 : vector<1x128xf32>, i32 -> vector<1x128xf32>
    %c127_i32_65 = arith.constant 127 : i32
    %166 = tpu.dynamic_rotate %162 by %c127_i32_65 dim 1 : vector<1x128xf32>, i32 -> vector<1x128xf32>
    %167 = arith.addf %165, %166 : vector<1x128xf32>
    %168 = tpu.bitcast %148 : vector<1x128xf32> -> vector<1x128xi32>
    %169 = tpu.bitcast %167 : vector<1x128xf32> -> vector<1x128xi32>
    %170 = arith.xori %168, %169 : vector<1x128xi32>
    %c-2147483648_i32_66 = arith.constant -2147483648 : i32
    %171 = vector.broadcast %c-2147483648_i32_66 : i32 to vector<1x128xi32>
    %172 = arith.andi %170, %171 : vector<1x128xi32>
    %173 = math.absf %148 : vector<1x128xf32>
    %174 = math.absf %167 : vector<1x128xf32>
    %175 = arith.minimumf %173, %174 : vector<1x128xf32>
    %176 = tpu.bitcast %175 : vector<1x128xf32> -> vector<1x128xi32>
    %177 = arith.ori %176, %172 : vector<1x128xi32>
    %178 = tpu.bitcast %177 : vector<1x128xi32> -> vector<1x128xf32>
    %179 = vector.broadcast %163 : f32 to vector<1x128xf32>
    %180 = arith.mulf %179, %178 : vector<1x128xf32>
    %c1_i32_67 = arith.constant 1 : i32
    %181 = tpu.dynamic_rotate %148 by %c1_i32_67 dim 1 : vector<1x128xf32>, i32 -> vector<1x128xf32>
    %c1_i32_68 = arith.constant 1 : i32
    %182 = tpu.dynamic_rotate %162 by %c1_i32_68 dim 1 : vector<1x128xf32>, i32 -> vector<1x128xf32>
    %183 = tpu.bitcast %181 : vector<1x128xf32> -> vector<1x128xi32>
    %184 = tpu.bitcast %182 : vector<1x128xf32> -> vector<1x128xi32>
    %185 = arith.xori %183, %184 : vector<1x128xi32>
    %c-2147483648_i32_69 = arith.constant -2147483648 : i32
    %186 = vector.broadcast %c-2147483648_i32_69 : i32 to vector<1x128xi32>
    %187 = arith.andi %185, %186 : vector<1x128xi32>
    %188 = math.absf %181 : vector<1x128xf32>
    %189 = math.absf %182 : vector<1x128xf32>
    %190 = arith.minimumf %188, %189 : vector<1x128xf32>
    %191 = tpu.bitcast %190 : vector<1x128xf32> -> vector<1x128xi32>
    %192 = arith.ori %191, %187 : vector<1x128xi32>
    %193 = tpu.bitcast %192 : vector<1x128xi32> -> vector<1x128xf32>
    %194 = vector.broadcast %164 : f32 to vector<1x128xf32>
    %195 = arith.mulf %194, %193 : vector<1x128xf32>
    %196 = arith.addf %195, %148 : vector<1x128xf32>
    %197 = arith.select %160, %180, %196 : vector<1x128xi1>, vector<1x128xf32>
    %cst_70 = arith.constant 0.000000e+00 : f32
    %cst_71 = arith.constant 2.000000e+00 : f32
    %198 = arith.subf %cst_70, %cst_71 : f32
    %cst_72 = arith.constant 2.000000e+00 : f32
    %199 = vector.broadcast %198 : f32 to vector<1x128xf32>
    %200 = arith.maximumf %199, %197 : vector<1x128xf32>
    %201 = vector.broadcast %cst_72 : f32 to vector<1x128xf32>
    %202 = arith.minimumf %201, %200 : vector<1x128xf32>
    %c0_73 = arith.constant 0 : index
    %c0_74 = arith.constant 0 : index
    %c0_75 = arith.constant 0 : index
    %203 = vector.load %arg4[%c0_73, %c0_74, %c0_75] : memref<5x1x128xf32, #tpu.memory_space<vmem>>, vector<1x1x128xf32>
    %204 = vector.shape_cast %203 : vector<1x1x128xf32> to vector<1x128xf32>
    %205 = vector.shape_cast %202 : vector<1x128xf32> to vector<1x1x128xf32>
    tpu.vector_store %arg4[%c0_73, %c0_74, %c0_75], %205 {strides = array<i32>} : memref<5x1x128xf32, #tpu.memory_space<vmem>>, vector<1x1x128xf32>,
    return
  }
  func.func @transform_0(%arg0: i32) -> (i32, i32) {
    %c0_i32 = arith.constant 0 : i32
    %c0_i32_0 = arith.constant 0 : i32
    %c0_i32_1 = arith.constant 0 : i32
    return %c0_i32, %c0_i32_0 : i32, i32
  }
  func.func @transform_1(%arg0: i32) -> (i32, i32, i32) {
    %c0_i32 = arith.constant 0 : i32
    %c0_i32_0 = arith.constant 0 : i32
    %c0_i32_1 = arith.constant 0 : i32
    return %c0_i32, %arg0, %c0_i32_0 : i32, i32, i32
  }
  func.func @transform_2(%arg0: i32) -> (i32, i32) {
    %c0_i32 = arith.constant 0 : i32
    %c0_i32_0 = arith.constant 0 : i32
    return %arg0, %c0_i32 : i32, i32
  }
  func.func @transform_3(%arg0: i32) -> (i32, i32, i32) {
    %c0_i32 = arith.constant 0 : i32
    %c0_i32_0 = arith.constant 0 : i32
    %c0_i32_1 = arith.constant 0 : i32
    return %c0_i32, %arg0, %c0_i32_0 : i32, i32, i32
  }
}

</mosaic_0001>

<llo_original>
// kernel: tpu_custom_call.1
$region0: #{tpu_custom_call.1}
  #allocation0 [shape = 'u32[]', space=smem, size = 0x4, offset = 0x4, fixed_abs, tag = 'smem constant byte address 0x4 - core index']
  #allocation1 [shape = 'u32[144,128]{1,0:T(1,128)}', space=vmem, size = 0x12000, scoped, tag = 'internal scratch']
  %s0 = inlined_call_operand.vmem [shape: f32[4,2], index: 0, kind: input, shape index: {}]
  %s1 = inlined_call_operand.vmem [shape: f32[4,1,128], index: 1, kind: input, shape index: {}]
  %s2 = inlined_call_operand.vmem [shape: f32[1,128], index: 2, kind: input, shape index: {}]
  %s3 = inlined_call_operand.hbm [shape: f32[5,1,128], index: 3, kind: output, shape index: {}]
  %s4 = sld [smem:[#allocation0]]
  $region26: #{tpu_custom_call.1} parent=0
    _
  %s6 = ssub.s32 1, %s4
  %s7 = scalar_select 0, %s6, %s4
  $region1: #{tpu_custom_call.1} parent=0
    #allocation2 [shape = 'u8[2048]{0}', space=smem, size = 0x800, scoped, tag = 'input window, operand 0, single buffered']
    #allocation3 [shape = 's32[1]{0}', space=sflag, size = 0x4, scoped, tag = 'scoped memory for tpu_custom_call.1']
    #allocation4 [shape = 's32[1]{0}', space=sflag, size = 0x4, scoped, tag = 'scoped memory for tpu_custom_call.1']
    #allocation5 [shape = 'u8[2560]{0}', space=vmem, size = 0xc00, scoped, tag = 'output window, operand 0, single buffered']
    %8 = vsyncpa [#allocation4], 0
    %9 = vsyncpa [#allocation3], 0
    // Predicated region
    $region2: #{tpu_custom_call.1} parent=1 // pred_check
      _
    $region3: #{tpu_custom_call.1} parent=1 // pred_check_branch
      %11 = sbr.rel (0) target = $region5
    $region4: #{tpu_custom_call.1} parent=1 // pred_region
      %s13 = ssub.s32 64, 64
      %14 = vsyncadd [#allocation4], %s13
      %s16 = sshll.u32 %s0, 4
      %s17 = int_to_ptr.vmem [resolvable:$true] %s16
      %19 = dma.vmem_to_smem %s17, 64, [#allocation2], [#allocation4]
    $region5: #{tpu_custom_call.1} parent=1 // pred_fallthru
      _
    // Predicated region
    $region6: #{tpu_custom_call.1} parent=1 // pred_check
      _
    $region7: #{tpu_custom_call.1} parent=1 // pred_check_branch
      %21 = sbr.rel (0) target = $region9
    $region8: #{tpu_custom_call.1} parent=1 // pred_region
      _
    $region9: #{tpu_custom_call.1} parent=1 // pred_fallthru
      _
    // Predicated region
    $region10: #{tpu_custom_call.1} parent=1 // pred_check
      _
    $region11: #{tpu_custom_call.1} parent=1 // pred_check_branch
      %23 = sbr.rel (0) target = $region13
    $region12: #{tpu_custom_call.1} parent=1 // pred_region
      _
    $region13: #{tpu_custom_call.1} parent=1 // pred_fallthru
      _
    // Predicated region
    $region14: #{tpu_custom_call.1} parent=1 // pred_check
      _
    $region15: #{tpu_custom_call.1} parent=1 // pred_check_branch
      %25 = sbr.rel (0) target = $region17
    $region16: #{tpu_custom_call.1} parent=1 // pred_region
      %26 = dma.done [#allocation4], 64
    $region17: #{tpu_custom_call.1} parent=1 // pred_fallthru
      _
    %27 = sfence
    %v28 = vlaneseq
    %v29 = vand.u32 %v28, 127
    %v30 = vld [vmem:[%s2] sm:$0x1]
    %v31 = vmax.f32 %v30, -2.0
    %v32 = vmin.f32 %v31, 2.0
    %s33 = scalar_lea.vmem [#allocation5], 4
    %34 = vst [vmem:[%s33] sm:$0x1] %v32
    %v35 = vand.u32 %v29, 8
    %vm36 = vcmp.eq.s32.totalorder %v35, 0
    %s37 = scalar_lea.vmem %s1, 3
    %v38 = vld [vmem:[%s37] sm:$0x1]
    %s39 = sld [smem:[#allocation2 + $0x180]]
    %s40 = sld [smem:[#allocation2 + $0x181]]
    %41 = vrot.lane.b32.xlu0 %v30, 120
    %v42 = vpop.permute.xlu0 %41
    %43 = vrot.lane.b32.xlu0 %v38, 120
    %v44 = vpop.permute.xlu0 %43
    %v45 = vadd.f32 %v42, %v44
    %v48 = vxor.u32 %v30, %v45
    %v49 = vand.u32 %v48, 2147483648
    %v50 = vand.u32 2147483647, %v30
    %v51 = vand.u32 2147483647, %v45
    %v52 = vmin.f32 %v50, %v51
    %v54 = vor.u32 %v52, %v49
    %v56 = vstv %s39
    %v57 = vmul.f32 %v56, %v54
    %58 = vrot.lane.b32.xlu0 %v30, 8
    %v59 = vpop.permute.xlu0 %58
    %60 = vrot.lane.b32.xlu0 %v38, 8
    %v61 = vpop.permute.xlu0 %60
    %v64 = vxor.u32 %v59, %v61
    %v65 = vand.u32 %v64, 2147483648
    %v66 = vand.u32 2147483647, %v59
    %v67 = vand.u32 2147483647, %v61
    %v68 = vmin.f32 %v66, %v67
    %v70 = vor.u32 %v68, %v65
    %v72 = vstv %s40
    %v73 = vmul.f32 %v72, %v70
    %v74 = vadd.f32 %v73, %v30
    %v75 = vsel %vm36, %v57, %v74
    %v76 = vmax.f32 %v75, -2.0
    %v77 = vmin.f32 %v76, 2.0
    %s78 = scalar_lea.vmem [#allocation5], 3
    %79 = vst [vmem:[%s78] sm:$0x1] %v77
    %v80 = vand.u32 %v29, 4
    %vm81 = vcmp.eq.s32.totalorder %v80, 0
    %s82 = scalar_lea.vmem %s1, 2
    %v83 = vld [vmem:[%s82] sm:$0x1]
    %s84 = sld [smem:[#allocation2 + $0x100]]
    %s85 = sld [smem:[#allocation2 + $0x101]]
    %86 = vrot.lane.b32.xlu0 %v75, 124
    %v87 = vpop.permute.xlu0 %86
    %88 = vrot.lane.b32.xlu0 %v83, 124
    %v89 = vpop.permute.xlu0 %88
    %v90 = vadd.f32 %v87, %v89
    %v93 = vxor.u32 %v75, %v90
    %v94 = vand.u32 %v93, 2147483648
    %v95 = vand.u32 2147483647, %v75
    %v96 = vand.u32 2147483647, %v90
    %v97 = vmin.f32 %v95, %v96
    %v99 = vor.u32 %v97, %v94
    %v101 = vstv %s84
    %v102 = vmul.f32 %v101, %v99
    %103 = vrot.lane.b32.xlu0 %v75, 4
    %v104 = vpop.permute.xlu0 %103
    %105 = vrot.lane.b32.xlu0 %v83, 4
    %v106 = vpop.permute.xlu0 %105
    %v109 = vxor.u32 %v104, %v106
    %v110 = vand.u32 %v109, 2147483648
    %v111 = vand.u32 2147483647, %v104
    %v112 = vand.u32 2147483647, %v106
    %v113 = vmin.f32 %v111, %v112
    %v115 = vor.u32 %v113, %v110
    %v117 = vstv %s85
    %v118 = vmul.f32 %v117, %v115
    %v119 = vadd.f32 %v118, %v75
    %v120 = vsel %vm81, %v102, %v119
    %v121 = vmax.f32 %v120, -2.0
    %v122 = vmin.f32 %v121, 2.0
    %s123 = scalar_lea.vmem [#allocation5], 2
    %124 = vst [vmem:[%s123] sm:$0x1] %v122
    %v125 = vand.u32 %v29, 2
    %vm126 = vcmp.eq.s32.totalorder %v125, 0
    %s127 = scalar_lea.vmem %s1, 1
    %v128 = vld [vmem:[%s127] sm:$0x1]
    %s129 = sld [smem:[#allocation2 + $0x80]]
    %s130 = sld [smem:[#allocation2 + $0x81]]
    %131 = vrot.lane.b32.xlu0 %v120, 126
    %v132 = vpop.permute.xlu0 %131
    %133 = vrot.lane.b32.xlu0 %v128, 126
    %v134 = vpop.permute.xlu0 %133
    %v135 = vadd.f32 %v132, %v134
    %v138 = vxor.u32 %v120, %v135
    %v139 = vand.u32 %v138, 2147483648
    %v140 = vand.u32 2147483647, %v120
    %v141 = vand.u32 2147483647, %v135
    %v142 = vmin.f32 %v140, %v141
    %v144 = vor.u32 %v142, %v139
    %v146 = vstv %s129
    %v147 = vmul.f32 %v146, %v144
    %148 = vrot.lane.b32.xlu0 %v120, 2
    %v149 = vpop.permute.xlu0 %148
    %150 = vrot.lane.b32.xlu0 %v128, 2
    %v151 = vpop.permute.xlu0 %150
    %v154 = vxor.u32 %v149, %v151
    %v155 = vand.u32 %v154, 2147483648
    %v156 = vand.u32 2147483647, %v149
    %v157 = vand.u32 2147483647, %v151
    %v158 = vmin.f32 %v156, %v157
    %v160 = vor.u32 %v158, %v155
    %v162 = vstv %s130
    %v163 = vmul.f32 %v162, %v160
    %v164 = vadd.f32 %v163, %v120
    %v165 = vsel %vm126, %v147, %v164
    %v166 = vmax.f32 %v165, -2.0
    %v167 = vmin.f32 %v166, 2.0
    %s168 = scalar_lea.vmem [#allocation5], 1
    %169 = vst [vmem:[%s168] sm:$0x1] %v167
    %v170 = vand.u32 %v29, 1
    %vm171 = vcmp.eq.s32.totalorder %v170, 0
    %v172 = vld [vmem:[%s1] sm:$0x1]
    %s173 = sld [smem:[#allocation2]]
    %s174 = sld [smem:[#allocation2 + $0x1]]
    %175 = vrot.lane.b32.xlu0 %v165, 127
    %v176 = vpop.permute.xlu0 %175
    %177 = vrot.lane.b32.xlu0 %v172, 127
    %v178 = vpop.permute.xlu0 %177
    %v179 = vadd.f32 %v176, %v178
    %v182 = vxor.u32 %v165, %v179
    %v183 = vand.u32 %v182, 2147483648
    %v184 = vand.u32 2147483647, %v165
    %v185 = vand.u32 2147483647, %v179
    %v186 = vmin.f32 %v184, %v185
    %v188 = vor.u32 %v186, %v183
    %v190 = vstv %s173
    %v191 = vmul.f32 %v190, %v188
    %192 = vrot.lane.b32.xlu0 %v165, 1
    %v193 = vpop.permute.xlu0 %192
    %194 = vrot.lane.b32.xlu0 %v172, 1
    %v195 = vpop.permute.xlu0 %194
    %v198 = vxor.u32 %v193, %v195
    %v199 = vand.u32 %v198, 2147483648
    %v200 = vand.u32 2147483647, %v193
    %v201 = vand.u32 2147483647, %v195
    %v202 = vmin.f32 %v200, %v201
    %v204 = vor.u32 %v202, %v199
    %v206 = vstv %s174
    %v207 = vmul.f32 %v206, %v204
    %v208 = vadd.f32 %v207, %v165
    %v209 = vsel %vm171, %v191, %v208
    %v210 = vmax.f32 %v209, -2.0
    %v211 = vmin.f32 %v210, 2.0
    %212 = vst [vmem:[#allocation5] sm:$0x1] %v211
    // Predicated region
    $region18: #{tpu_custom_call.1} parent=1 // pred_check
      _
    $region19: #{tpu_custom_call.1} parent=1 // pred_check_branch
      %214 = sbr.rel (0) target = $region21
    $region20: #{tpu_custom_call.1} parent=1 // pred_region
      %s216 = ssub.s32 80, 80
      %217 = vsyncadd [#allocation3], %s216
      %s218 = sshll.u32 [#allocation5], 4
      %s219 = int_to_ptr.vmem [resolvable:$true] %s218
      %224 = dma.vmem_to_hbm [thread:$0]  %s219, 80, %s3, [#allocation3], 16, 16, 1
    $region21: #{tpu_custom_call.1} parent=1 // pred_fallthru
      _
    // Predicated region
    $region22: #{tpu_custom_call.1} parent=1 // pred_check
      _
    $region23: #{tpu_custom_call.1} parent=1 // pred_check_branch
      %226 = sbr.rel (0) target = $region25
    $region24: #{tpu_custom_call.1} parent=1 // pred_region
      %227 = dma.done [#allocation3], 80
    $region25: #{tpu_custom_call.1} parent=1 // pred_fallthru
      _
    %228 = vsyncpa [#allocation3], 1
    %229 = vsyncpa [#allocation4], 1

</llo_original>
